<compile_context>
chip_gen: v7x
topology: tpu7x:2x2x1
jax: 0.10.0
libtpu: 0.0.40
codegen_flags: <defaults>
</compile_context>

<pallas_src>
import functools

import jax
import jax.numpy as jnp
from jax import lax
from jax.experimental import pallas as pl
from jax.experimental.pallas import tpu as pltpu

EPS = 1e-5
_SMALL_W_BYTES = 4 * 1024 * 1024      # single-j-tile threshold (safe on all gens)
_VMEM_BUDGET = 40 * 1024 * 1024       # tile-sizing budget, safe for v7x's 64 MiB


def _round_up(x, m):
    return (x + m - 1) // m * m


def _prenorm_linear_kernel(x_ref, w_ref, b_ref, o_ref, y_ref):
    # x_ref: (tm, D) rows; w_ref: (D, tn) folded weights (bf16);
    # b_ref: (1, tn) folded bias (f32); o_ref: (tm, tn);
    # y_ref: (tm, D) bf16 scratch holding the normalized rows, cached across j.

    @pl.when(pl.program_id(1) == 0)
    def _():
        # LayerNorm over the last dim (biased variance, eps inside rsqrt),
        # matching torch.nn.LayerNorm.  Statistics in f32 (VPU/EUP); computed
        # once per row tile and reused for every output-column tile.
        x = x_ref[...].astype(jnp.float32)
        mean = jnp.mean(x, axis=-1, keepdims=True)
        xc = x - mean
        var = jnp.mean(xc * xc, axis=-1, keepdims=True)
        y_ref[...] = (xc * lax.rsqrt(var + EPS)).astype(y_ref.dtype)

    # gamma/beta were folded into w/b at init, so go straight to the MXU with
    # bf16 operands and an f32 accumulator.
    out = jnp.dot(y_ref[...], w_ref[...], preferred_element_type=jnp.float32)
    out = out + b_ref[...]
    o_ref[...] = out.astype(o_ref.dtype)


def fold_prenorm_linear_params(gamma, beta, w, b, *, mxu_dtype=jnp.bfloat16,
                               block_cols=256):
    """One-time (init-time) fold of the LayerNorm affine into the Linear params.

    (x_hat * gamma + beta) @ W + b == x_hat @ (gamma[:, None] * W) + (beta @ W + b)

    Also pads the output dimension to a multiple of `block_cols` at init time
    when the kernel will stream W tiles, so no per-call jnp.pad of the weights
    is needed.  Returns (w_folded, b_folded, out_dim).
    """
    gamma = gamma.reshape(-1).astype(jnp.float32)
    beta = beta.reshape(-1).astype(jnp.float32)
    w32 = w.astype(jnp.float32)
    # NOTE: the LN affine is applied at bf16 precision via the folded weights;
    # keep gamma as a separate f32 multiply if tighter precision is required.
    w_folded = (gamma[:, None] * w32).astype(mxu_dtype)
    b_folded = (beta @ w32 + b.reshape(-1).astype(jnp.float32)).reshape(1, -1)

    D, H = w_folded.shape
    w_bytes = D * H * jnp.dtype(mxu_dtype).itemsize
    if w_bytes > _SMALL_W_BYTES and H > block_cols and H % block_cols != 0:
        Hp = _round_up(H, block_cols)
        w_folded = jnp.pad(w_folded, ((0, 0), (0, Hp - H)))
        b_folded = jnp.pad(b_folded, ((0, 0), (0, Hp - H)))
    return w_folded, b_folded, H


@functools.partial(
    jax.jit, static_argnames=("out_dim", "block_rows", "block_cols", "out_dtype"))
def prenorm_linear(x, w_folded, b_folded, *, out_dim=None, block_rows=512,
                   block_cols=256, out_dtype=None):
    """x: (B, S, D) -> (B, S, H), computing Linear(LayerNorm(x)) fused."""
    B, S, D = x.shape
    Hp = w_folded.shape[1]
    H = Hp if out_dim is None else out_dim
    out_dtype = x.dtype if out_dtype is None else out_dtype
    out_item = jnp.dtype(out_dtype).itemsize
    w_item = jnp.dtype(w_folded.dtype).itemsize
    x_item = jnp.dtype(x.dtype).itemsize
    M = B * S
    x2 = x.reshape(M, D)

    # ---- column (H) tiling -------------------------------------------------
    # Single j tile when the folded W fits in a few MiB: W is DMA'd exactly
    # once for the whole kernel and there is nothing to re-stream.  Otherwise
    # stream lane-dense block_cols-wide tiles (H already padded at fold time).
    if D * Hp * w_item <= _SMALL_W_BYTES or Hp <= block_cols:
        tn = Hp
    else:
        tn = block_cols
        if Hp % tn != 0:  # fallback only; fold_prenorm_linear_params pads at init
            Hp2 = _round_up(Hp, tn)
            w_folded = jnp.pad(w_folded, ((0, 0), (0, Hp2 - Hp)))
            b_folded = jnp.pad(b_folded, ((0, 0), (0, Hp2 - Hp)))
            Hp = Hp2
    Np = Hp

    # ---- row (M) tiling, sized against a v7x-safe VMEM budget --------------
    sublane = {4: 8, 2: 16, 1: 32}.get(x_item, 8)
    w_tile_bytes = 2 * D * tn * w_item + 2 * tn * 4            # W + bias (dbl-buf)
    row_bytes = 2 * D * x_item + D * w_item + 2 * tn * out_item  # x dbl-buf + cache + out
    tm_cap = max(sublane, (_VMEM_BUDGET - w_tile_bytes) // max(row_bytes, 1))
    tm_cap = max(sublane, (tm_cap // sublane) * sublane)
    tm_cap = min(tm_cap, block_rows)

    if M <= tm_cap and M % sublane == 0:
        tm = M                                  # one row tile, no pad, no slice
    else:
        tm = min(tm_cap, _round_up(M, sublane))
        if M % sublane == 0:
            # Prefer a tile that divides M (avoids the per-call pad copy) as
            # long as it does not cost more than 2x in tile size.
            for cand in range(tm, max(sublane, tm // 2) - 1, -sublane):
                if M % cand == 0:
                    tm = cand
                    break
    Mp = _round_up(M, tm)
    if Mp != M:
        x2 = jnp.pad(x2, ((0, Mp - M), (0, 0)))

    # ---- compiler params / cost estimate ------------------------------------
    vmem_needed = (2 * tm * D * x_item       # x double-buffer
                   + tm * D * w_item         # normalized-row cache (bf16)
                   + w_tile_bytes            # W + bias double-buffers
                   + 2 * tm * tn * out_item)  # output double-buffer
    vmem_limit = int(min(max(int(vmem_needed * 1.25) + (2 << 20), 32 << 20),
                         64 << 20))
    n_row_tiles = Mp // tm
    cost = pl.CostEstimate(
        flops=2 * Mp * D * Np + 6 * Mp * D,
        transcendentals=Mp,
        bytes_accessed=(Mp * D * x_item
                        + n_row_tiles * D * Np * w_item
                        + Mp * Np * out_item))

    out = pl.pallas_call(
        _prenorm_linear_kernel,
        out_shape=jax.ShapeDtypeStruct((Mp, Np), out_dtype),
        grid_spec=pltpu.PrefetchScalarGridSpec(
            num_scalar_prefetch=0,
            grid=(Mp // tm, Np // tn),
            in_specs=[
                pl.BlockSpec((tm, D), lambda i, j: (i, 0)),   # x rows (full D for LN)
                pl.BlockSpec((D, tn), lambda i, j: (0, j)),   # folded W tile (bf16)
                pl.BlockSpec((1, tn), lambda i, j: (0, j)),   # folded bias tile (f32)
            ],
            out_specs=pl.BlockSpec((tm, tn), lambda i, j: (i, j)),
            scratch_shapes=[pltpu.VMEM((tm, D), w_folded.dtype)],  # LN cache
        ),
        compiler_params=pltpu.CompilerParams(
            # j carries the LN cache -> "arbitrary"; i is independent -> "parallel"
            # (megacore / 2-TC v7x shards the row axis).
            dimension_semantics=("parallel", "arbitrary"),
            vmem_limit_bytes=vmem_limit),
        cost_estimate=cost,
    )(x2, w_folded, b_folded)

    if Mp != M or Np != H:
        out = out[:M, :H]
    return out.reshape(B, S, H)


def _reference(x, gamma, beta, w, b):
    xf = x.astype(jnp.float32)
    mean = jnp.mean(xf, axis=-1, keepdims=True)
    var = jnp.mean((xf - mean) ** 2, axis=-1, keepdims=True)
    y = (xf - mean) * lax.rsqrt(var + EPS)
    y = y * gamma.reshape(-1) + beta.reshape(-1)
    return y @ w.astype(jnp.float32) + b.reshape(-1)


if __name__ == "__main__":
    key = jax.random.PRNGKey(0)
    # Small shapes; M = B*S = 144 and H = 192 exercise the non-128-multiple
    # (but tile == full-dim) paths without any per-call pad/slice copies.
    B, S, D, H = 2, 72, 128, 192

    k_x, k_w, k_g, k_b, k_bias = jax.random.split(key, 5)
    x = jax.random.normal(k_x, (B, S, D), dtype=jnp.float32)

    # PreNorm params: nn.LayerNorm(dim) affine + fn = nn.Linear(dim, hidden).
    gamma = 1.0 + 0.1 * jax.random.normal(k_g, (D,), dtype=jnp.float32)
    beta = 0.05 * jax.random.normal(k_b, (D,), dtype=jnp.float32)
    w = 0.02 * jax.random.normal(k_w, (D, H), dtype=jnp.float32)
    b = 0.01 * jax.random.normal(k_bias, (H,), dtype=jnp.float32)

    # One-time parameter fold + pad (done at init, not per call).
    w_folded, b_folded, out_dim = fold_prenorm_linear_params(gamma, beta, w, b)

    out = prenorm_linear(x, w_folded, b_folded, out_dim=out_dim)
    jax.block_until_ready(out)

    ref = _reference(x, gamma, beta, w, b)
    assert out.shape == (B, S, H)
    # bf16 MXU operands vs. an all-f32 reference -> modest tolerance.
    assert jnp.allclose(out, ref, atol=3e-2, rtol=3e-2), "mismatch vs reference"

    # TODO(synk): PreNorm wraps an arbitrary `fn`; only the canonical
    # fn = nn.Linear(dim, hidden) case is fused with the LayerNorm here.
    print("KERNEL_OK")
</pallas_src>

<mosaic_0001>
module attributes {stable_mosaic.version = 11 : i64} {
  func.func @_prenorm_linear_kernel(%arg0: i32, %arg1: i32, %arg2: memref<144x128xf32, #tpu.memory_space<vmem>>, %arg3: memref<128x192xbf16, #tpu.memory_space<vmem>>, %arg4: memref<1x192xf32, #tpu.memory_space<vmem>>, %arg5: memref<144x192xf32, #tpu.memory_space<vmem>>, %arg6: memref<144x128xbf16, #tpu.memory_space<vmem>>) attributes {dimension_semantics = [#tpu.dimension_semantics<parallel>, #tpu.dimension_semantics<arbitrary>], iteration_bounds = array<i64: 1, 1>, scalar_prefetch = 0 : i64, scratch_operands = 1 : i64, tpu.core_type = #tpu.core_type<tc>, window_params = [{transform_indices = @transform_0, window_bounds = array<i64: 144, 128>}, {transform_indices = @transform_1, window_bounds = array<i64: 128, 192>}, {transform_indices = @transform_2, window_bounds = array<i64: 1, 192>}, {transform_indices = @transform_3, window_bounds = array<i64: 144, 192>}]} {
    %c0_i32 = arith.constant 0 : i32
    %0 = arith.cmpi eq, %arg1, %c0_i32 : i32
    %1 = arith.extui %0 : i1 to i32
    %c0_i32_0 = arith.constant 0 : i32
    %2 = arith.cmpi ne, %1, %c0_i32_0 : i32
    scf.if %2 {
      %c0_8 = arith.constant 0 : index
      %c0_9 = arith.constant 0 : index
      %10 = vector.load %arg2[%c0_8, %c0_9] : memref<144x128xf32, #tpu.memory_space<vmem>>, vector<144x128xf32>
      %cst_10 = arith.constant dense<0.000000e+00> : vector<144xf32>
      %11 = vector.multi_reduction <add>, %10, %cst_10 [1] : vector<144x128xf32> to vector<144xf32>
      %12 = vector.shape_cast %11 : vector<144xf32> to vector<144x1xf32>
      %cst_11 = arith.constant 1.280000e+02 : f32
      %13 = vector.broadcast %cst_11 : f32 to vector<144x1xf32>
      %14 = arith.divf %12, %13 : vector<144x1xf32>
      %15 = vector.broadcast %14 : vector<144x1xf32> to vector<144x128xf32>
      %16 = arith.subf %10, %15 : vector<144x128xf32>
      %17 = arith.mulf %16, %16 : vector<144x128xf32>
      %cst_12 = arith.constant dense<0.000000e+00> : vector<144xf32>
      %18 = vector.multi_reduction <add>, %17, %cst_12 [1] : vector<144x128xf32> to vector<144xf32>
      %19 = vector.shape_cast %18 : vector<144xf32> to vector<144x1xf32>
      %cst_13 = arith.constant 1.280000e+02 : f32
      %20 = vector.broadcast %cst_13 : f32 to vector<144x1xf32>
      %21 = arith.divf %19, %20 : vector<144x1xf32>
      %cst_14 = arith.constant 9.99999974E-6 : f32
      %22 = vector.broadcast %cst_14 : f32 to vector<144x1xf32>
      %23 = arith.addf %21, %22 : vector<144x1xf32>
      %24 = math.rsqrt %23 : vector<144x1xf32>
      %25 = vector.broadcast %24 : vector<144x1xf32> to vector<144x128xf32>
      %26 = arith.mulf %16, %25 : vector<144x128xf32>
      %27 = arith.truncf %26 : vector<144x128xf32> to vector<144x128xbf16>
      %c0_15 = arith.constant 0 : index
      %c0_16 = arith.constant 0 : index
      %28 = vector.load %arg6[%c0_15, %c0_16] : memref<144x128xbf16, #tpu.memory_space<vmem>>, vector<144x128xbf16>
      tpu.vector_store %arg6[%c0_15, %c0_16], %27 {strides = array<i32>} : memref<144x128xbf16, #tpu.memory_space<vmem>>, vector<144x128xbf16>,
    } else {
    }
    %c0 = arith.constant 0 : index
    %c0_1 = arith.constant 0 : index
    %3 = vector.load %arg6[%c0, %c0_1] : memref<144x128xbf16, #tpu.memory_space<vmem>>, vector<144x128xbf16>
    %c0_2 = arith.constant 0 : index
    %c0_3 = arith.constant 0 : index
    %4 = vector.load %arg3[%c0_2, %c0_3] : memref<128x192xbf16, #tpu.memory_space<vmem>>, vector<128x192xbf16>
    %cst = arith.constant dense<0.000000e+00> : vector<144x192xf32>
    %5 = tpu.matmul %3, %4, %cst {dimension_numbers = #tpu.dot_dimension_numbers<[1], [0], [0], [1], [0, 0, 1, 1], [], []>} : vector<144x128xbf16>, vector<128x192xbf16>, vector<144x192xf32> -> vector<144x192xf32>
    %c0_4 = arith.constant 0 : index
    %c0_5 = arith.constant 0 : index
    %6 = vector.load %arg4[%c0_4, %c0_5] : memref<1x192xf32, #tpu.memory_space<vmem>>, vector<1x192xf32>
    %7 = vector.broadcast %6 : vector<1x192xf32> to vector<144x192xf32>
    %8 = arith.addf %5, %7 : vector<144x192xf32>
    %c0_6 = arith.constant 0 : index
    %c0_7 = arith.constant 0 : index
    %9 = vector.load %arg5[%c0_6, %c0_7] : memref<144x192xf32, #tpu.memory_space<vmem>>, vector<144x192xf32>
    tpu.vector_store %arg5[%c0_6, %c0_7], %8 {strides = array<i32>} : memref<144x192xf32, #tpu.memory_space<vmem>>, vector<144x192xf32>,
    return
  }
  func.func @transform_0(%arg0: i32, %arg1: i32) -> (i32, i32) {
    %c0_i32 = arith.constant 0 : i32
    %c0_i32_0 = arith.constant 0 : i32
    return %arg0, %c0_i32 : i32, i32
  }
  func.func @transform_1(%arg0: i32, %arg1: i32) -> (i32, i32) {
    %c0_i32 = arith.constant 0 : i32
    %c0_i32_0 = arith.constant 0 : i32
    return %c0_i32, %arg1 : i32, i32
  }
  func.func @transform_2(%arg0: i32, %arg1: i32) -> (i32, i32) {
    %c0_i32 = arith.constant 0 : i32
    %c0_i32_0 = arith.constant 0 : i32
    return %c0_i32, %arg1 : i32, i32
  }
  func.func @transform_3(%arg0: i32, %arg1: i32) -> (i32, i32) {
    %c0_i32 = arith.constant 0 : i32
    return %arg0, %arg1 : i32, i32
  }
}

</mosaic_0001>

<llo_original>
// kernel: prenorm_linear.1
$region0: #{prenorm_linear.1}
  #allocation0 [shape = 'u32[]', space=smem, size = 0x4, offset = 0x4, fixed_abs, tag = 'smem constant byte address 0x4 - core index']
  #allocation1 [shape = 'u32[144,128]{1,0:T(1,128)}', space=vmem, size = 0x12000, scoped, tag = 'internal scratch']
  #allocation2 [shape = 'bf16[144,128]{1,0:T(16,128)(2,1)}', space=vmem, size = 0x9000, scoped, tag = 'scratch operand']
  %s0 = inlined_call_operand.vmem [shape: f32[144,128], index: 0, kind: input, shape index: {}]
  %s1 = inlined_call_operand.vmem [shape: bf16[128,192], index: 1, kind: input, shape index: {}]
  %s2 = inlined_call_operand.vmem [shape: f32[1,192], index: 2, kind: input, shape index: {}]
  %s3 = inlined_call_operand.hbm [shape: f32[144,192], index: 3, kind: output, shape index: {}]
  %s4 = sld [smem:[#allocation0]]
  $region26: #{prenorm_linear.1} parent=0
    _
  %s6 = ssub.s32 1, %s4
  %s7 = scalar_select 0, %s6, %s4
  $region1: #{prenorm_linear.1} parent=0
    #allocation3 [shape = 'u8[147456]{0}', space=vmem, size = 0x24000, scoped, tag = 'output window, operand 0, single buffered']
    #allocation4 [shape = 's32[1]{0}', space=sflag, size = 0x4, scoped, tag = 'scoped memory for prenorm_linear.1']
    %8 = vsyncpa [#allocation4], 0
    // Predicated region
    $region2: #{prenorm_linear.1} parent=1 // pred_check
      _
    $region3: #{prenorm_linear.1} parent=1 // pred_check_branch
      %10 = sbr.rel (0) target = $region5
    $region4: #{prenorm_linear.1} parent=1 // pred_region
      _
    $region5: #{prenorm_linear.1} parent=1 // pred_fallthru
      _
    // Predicated region
    $region6: #{prenorm_linear.1} parent=1 // pred_check
      _
    $region7: #{prenorm_linear.1} parent=1 // pred_check_branch
      %12 = sbr.rel (0) target = $region9
    $region8: #{prenorm_linear.1} parent=1 // pred_region
      _
    $region9: #{prenorm_linear.1} parent=1 // pred_fallthru
      _
    // Predicated region
    $region10: #{prenorm_linear.1} parent=1 // pred_check
      _
    $region11: #{prenorm_linear.1} parent=1 // pred_check_branch
      %14 = sbr.rel (0) target = $region13
    $region12: #{prenorm_linear.1} parent=1 // pred_region
      _
    $region13: #{prenorm_linear.1} parent=1 // pred_fallthru
      _
    %p16 = scmp.eq.s32.totalorder 0, 0
    // Predicated region
    $region14: #{prenorm_linear.1} parent=1 // pred_check
      %p17 = pneg %p16
    $region15: #{prenorm_linear.1} parent=1 // pred_check_branch
      %19 = sbr.rel (%p17) target = $region17
    $region16: #{prenorm_linear.1} parent=1 // pred_region
      %v20 = vld [vmem:[%s0] sm:$0xff]
      %v21 = vld [vmem:[%s0 + $0x8] sm:$0xff]
      %v22 = vld [vmem:[%s0 + $0x10] sm:$0xff]
      %v23 = vld [vmem:[%s0 + $0x18] sm:$0xff]
      %v24 = vld [vmem:[%s0 + $0x20] sm:$0xff]
      %v25 = vld [vmem:[%s0 + $0x28] sm:$0xff]
      %v26 = vld [vmem:[%s0 + $0x30] sm:$0xff]
      %v27 = vld [vmem:[%s0 + $0x38] sm:$0xff]
      %v28 = vld [vmem:[%s0 + $0x40] sm:$0xff]
      %v29 = vld [vmem:[%s0 + $0x48] sm:$0xff]
      %v30 = vld [vmem:[%s0 + $0x50] sm:$0xff]
      %v31 = vld [vmem:[%s0 + $0x58] sm:$0xff]
      %v32 = vld [vmem:[%s0 + $0x60] sm:$0xff]
      %v33 = vld [vmem:[%s0 + $0x68] sm:$0xff]
      %v34 = vld [vmem:[%s0 + $0x70] sm:$0xff]
      %v35 = vld [vmem:[%s0 + $0x78] sm:$0xff]
      %v36 = vld [vmem:[%s0 + $0x80] sm:$0xff]
      %v37 = vld [vmem:[%s0 + $0x88] sm:$0xff]
      %38 = vadd.xlane.f32.xlu0 %v20
      %v39 = vpop.xlane.xlu0 %38
      %40 = vadd.xlane.f32.xlu0 %v21
      %v41 = vpop.xlane.xlu0 %40
      %42 = vadd.xlane.f32.xlu0 %v22
      %v43 = vpop.xlane.xlu0 %42
      %44 = vadd.xlane.f32.xlu0 %v23
      %v45 = vpop.xlane.xlu0 %44
      %46 = vadd.xlane.f32.xlu0 %v24
      %v47 = vpop.xlane.xlu0 %46
      %48 = vadd.xlane.f32.xlu0 %v25
      %v49 = vpop.xlane.xlu0 %48
      %50 = vadd.xlane.f32.xlu0 %v26
      %v51 = vpop.xlane.xlu0 %50
      %52 = vadd.xlane.f32.xlu0 %v27
      %v53 = vpop.xlane.xlu0 %52
      %54 = vadd.xlane.f32.xlu0 %v28
      %v55 = vpop.xlane.xlu0 %54
      %56 = vadd.xlane.f32.xlu0 %v29
      %v57 = vpop.xlane.xlu0 %56
      %58 = vadd.xlane.f32.xlu0 %v30
      %v59 = vpop.xlane.xlu0 %58
      %60 = vadd.xlane.f32.xlu0 %v31
      %v61 = vpop.xlane.xlu0 %60
      %62 = vadd.xlane.f32.xlu0 %v32
      %v63 = vpop.xlane.xlu0 %62
      %64 = vadd.xlane.f32.xlu0 %v33
      %v65 = vpop.xlane.xlu0 %64
      %66 = vadd.xlane.f32.xlu0 %v34
      %v67 = vpop.xlane.xlu0 %66
      %68 = vadd.xlane.f32.xlu0 %v35
      %v69 = vpop.xlane.xlu0 %68
      %70 = vadd.xlane.f32.xlu0 %v36
      %v71 = vpop.xlane.xlu0 %70
      %72 = vadd.xlane.f32.xlu0 %v37
      %v73 = vpop.xlane.xlu0 %72
      %v74 = vrcp.pop 128.0
      %v75 = vmul.f32 %v39, %v74
      %v76 = vmul.f32 %v41, %v74
      %v77 = vmul.f32 %v43, %v74
      %v78 = vmul.f32 %v45, %v74
      %v79 = vmul.f32 %v47, %v74
      %v80 = vmul.f32 %v49, %v74
      %v81 = vmul.f32 %v51, %v74
      %v82 = vmul.f32 %v53, %v74
      %v83 = vmul.f32 %v55, %v74
      %v84 = vmul.f32 %v57, %v74
      %v85 = vmul.f32 %v59, %v74
      %v86 = vmul.f32 %v61, %v74
      %v87 = vmul.f32 %v63, %v74
      %v88 = vmul.f32 %v65, %v74
      %v89 = vmul.f32 %v67, %v74
      %v90 = vmul.f32 %v69, %v74
      %v91 = vmul.f32 %v71, %v74
      %v92 = vmul.f32 %v73, %v74
      %v93 = vsub.f32 %v20, %v75
      %v94 = vsub.f32 %v21, %v76
      %v95 = vsub.f32 %v22, %v77
      %v96 = vsub.f32 %v23, %v78
      %v97 = vsub.f32 %v24, %v79
      %v98 = vsub.f32 %v25, %v80
      %v99 = vsub.f32 %v26, %v81
      %v100 = vsub.f32 %v27, %v82
      %v101 = vsub.f32 %v28, %v83
      %v102 = vsub.f32 %v29, %v84
      %v103 = vsub.f32 %v30, %v85
      %v104 = vsub.f32 %v31, %v86
      %v105 = vsub.f32 %v32, %v87
      %v106 = vsub.f32 %v33, %v88
      %v107 = vsub.f32 %v34, %v89
      %v108 = vsub.f32 %v35, %v90
      %v109 = vsub.f32 %v36, %v91
      %v110 = vsub.f32 %v37, %v92
      %v111 = vmul.f32 %v93, %v93
      %v112 = vmul.f32 %v94, %v94
      %v113 = vmul.f32 %v95, %v95
      %v114 = vmul.f32 %v96, %v96
      %v115 = vmul.f32 %v97, %v97
      %v116 = vmul.f32 %v98, %v98
      %v117 = vmul.f32 %v99, %v99
      %v118 = vmul.f32 %v100, %v100
      %v119 = vmul.f32 %v101, %v101
      %v120 = vmul.f32 %v102, %v102
      %v121 = vmul.f32 %v103, %v103
      %v122 = vmul.f32 %v104, %v104
      %v123 = vmul.f32 %v105, %v105
      %v124 = vmul.f32 %v106, %v106
      %v125 = vmul.f32 %v107, %v107
      %v126 = vmul.f32 %v108, %v108
      %v127 = vmul.f32 %v109, %v109
      %v128 = vmul.f32 %v110, %v110
      %129 = vadd.xlane.f32.xlu0 %v111
      %v130 = vpop.xlane.xlu0 %129
      %131 = vadd.xlane.f32.xlu0 %v112
      %v132 = vpop.xlane.xlu0 %131
      %133 = vadd.xlane.f32.xlu0 %v113
      %v134 = vpop.xlane.xlu0 %133
      %135 = vadd.xlane.f32.xlu0 %v114
      %v136 = vpop.xlane.xlu0 %135
      %137 = vadd.xlane.f32.xlu0 %v115
      %v138 = vpop.xlane.xlu0 %137
      %139 = vadd.xlane.f32.xlu0 %v116
      %v140 = vpop.xlane.xlu0 %139
      %141 = vadd.xlane.f32.xlu0 %v117
      %v142 = vpop.xlane.xlu0 %141
      %143 = vadd.xlane.f32.xlu0 %v118
      %v144 = vpop.xlane.xlu0 %143
      %145 = vadd.xlane.f32.xlu0 %v119
      %v146 = vpop.xlane.xlu0 %145
      %147 = vadd.xlane.f32.xlu0 %v120
      %v148 = vpop.xlane.xlu0 %147
      %149 = vadd.xlane.f32.xlu0 %v121
      %v150 = vpop.xlane.xlu0 %149
      %151 = vadd.xlane.f32.xlu0 %v122
      %v152 = vpop.xlane.xlu0 %151
      %153 = vadd.xlane.f32.xlu0 %v123
      %v154 = vpop.xlane.xlu0 %153
      %155 = vadd.xlane.f32.xlu0 %v124
      %v156 = vpop.xlane.xlu0 %155
      %157 = vadd.xlane.f32.xlu0 %v125
      %v158 = vpop.xlane.xlu0 %157
      %159 = vadd.xlane.f32.xlu0 %v126
      %v160 = vpop.xlane.xlu0 %159
      %161 = vadd.xlane.f32.xlu0 %v127
      %v162 = vpop.xlane.xlu0 %161
      %163 = vadd.xlane.f32.xlu0 %v128
      %v164 = vpop.xlane.xlu0 %163
      %v165 = vmul.f32 %v130, %v74
      %v166 = vmul.f32 %v132, %v74
      %v167 = vmul.f32 %v134, %v74
      %v168 = vmul.f32 %v136, %v74
      %v169 = vmul.f32 %v138, %v74
      %v170 = vmul.f32 %v140, %v74
      %v171 = vmul.f32 %v142, %v74
      %v172 = vmul.f32 %v144, %v74
      %v173 = vmul.f32 %v146, %v74
      %v174 = vmul.f32 %v148, %v74
      %v175 = vmul.f32 %v150, %v74
      %v176 = vmul.f32 %v152, %v74
      %v177 = vmul.f32 %v154, %v74
      %v178 = vmul.f32 %v156, %v74
      %v179 = vmul.f32 %v158, %v74
      %v180 = vmul.f32 %v160, %v74
      %v181 = vmul.f32 %v162, %v74
      %v182 = vmul.f32 %v164, %v74
      %v183 = vadd.f32 %v165, 1e-05
      %v184 = vadd.f32 %v166, 1e-05
      %v185 = vadd.f32 %v167, 1e-05
      %v186 = vadd.f32 %v168, 1e-05
      %v187 = vadd.f32 %v169, 1e-05
      %v188 = vadd.f32 %v170, 1e-05
      %v189 = vadd.f32 %v171, 1e-05
      %v190 = vadd.f32 %v172, 1e-05
      %v191 = vadd.f32 %v173, 1e-05
      %v192 = vadd.f32 %v174, 1e-05
      %v193 = vadd.f32 %v175, 1e-05
      %v194 = vadd.f32 %v176, 1e-05
      %v195 = vadd.f32 %v177, 1e-05
      %v196 = vadd.f32 %v178, 1e-05
      %v197 = vadd.f32 %v179, 1e-05
      %v198 = vadd.f32 %v180, 1e-05
      %v199 = vadd.f32 %v181, 1e-05
      %v200 = vadd.f32 %v182, 1e-05
      %v201 = vrsqrt.pop %v183
      %v202 = vrsqrt.pop %v184
      %v203 = vrsqrt.pop %v185
      %v204 = vrsqrt.pop %v186
      %v205 = vrsqrt.pop %v187
      %v206 = vrsqrt.pop %v188
      %v207 = vrsqrt.pop %v189
      %v208 = vrsqrt.pop %v190
      %v209 = vrsqrt.pop %v191
      %v210 = vrsqrt.pop %v192
      %v211 = vrsqrt.pop %v193
      %v212 = vrsqrt.pop %v194
      %v213 = vrsqrt.pop %v195
      %v214 = vrsqrt.pop %v196
      %v215 = vrsqrt.pop %v197
      %v216 = vrsqrt.pop %v198
      %v217 = vrsqrt.pop %v199
      %v218 = vrsqrt.pop %v200
      %v219 = vmul.f32 %v93, %v201
      %v220 = vmul.f32 %v94, %v202
      %v221 = vmul.f32 %v95, %v203
      %v222 = vmul.f32 %v96, %v204
      %v223 = vmul.f32 %v97, %v205
      %v224 = vmul.f32 %v98, %v206
      %v225 = vmul.f32 %v99, %v207
      %v226 = vmul.f32 %v100, %v208
      %v227 = vmul.f32 %v101, %v209
      %v228 = vmul.f32 %v102, %v210
      %v229 = vmul.f32 %v103, %v211
      %v230 = vmul.f32 %v104, %v212
      %v231 = vmul.f32 %v105, %v213
      %v232 = vmul.f32 %v106, %v214
      %v233 = vmul.f32 %v107, %v215
      %v234 = vmul.f32 %v108, %v216
      %v235 = vmul.f32 %v109, %v217
      %v236 = vmul.f32 %v110, %v218
      %v237 = vpack.c.bf16 %v220, %v219
      %v238 = vpack.c.bf16 %v222, %v221
      %v239 = vpack.c.bf16 %v224, %v223
      %v240 = vpack.c.bf16 %v226, %v225
      %v241 = vpack.c.bf16 %v228, %v227
      %v242 = vpack.c.bf16 %v230, %v229
      %v243 = vpack.c.bf16 %v232, %v231
      %v244 = vpack.c.bf16 %v234, %v233
      %v245 = vpack.c.bf16 %v236, %v235
      %246 = vst [vmem:[#allocation2] sm:$0xff] %v237
      %247 = vst [vmem:[#allocation2 + $0x8] sm:$0xff] %v238
      %248 = vst [vmem:[#allocation2 + $0x10] sm:$0xff] %v239
      %249 = vst [vmem:[#allocation2 + $0x18] sm:$0xff] %v240
      %250 = vst [vmem:[#allocation2 + $0x20] sm:$0xff] %v241
      %251 = vst [vmem:[#allocation2 + $0x28] sm:$0xff] %v242
      %252 = vst [vmem:[#allocation2 + $0x30] sm:$0xff] %v243
      %253 = vst [vmem:[#allocation2 + $0x38] sm:$0xff] %v244
      %254 = vst [vmem:[#allocation2 + $0x40] sm:$0xff] %v245
    $region17: #{prenorm_linear.1} parent=1 // pred_fallthru
      _
    %v255 = vld [vmem:[#allocation2] sm:$0xff]
    %v256 = vld [vmem:[#allocation2 + $0x8] sm:$0xff]
    %v257 = vld [vmem:[#allocation2 + $0x10] sm:$0xff]
    %v258 = vld [vmem:[#allocation2 + $0x18] sm:$0xff]
    %v259 = vld [vmem:[#allocation2 + $0x20] sm:$0xff]
    %v260 = vld [vmem:[#allocation2 + $0x28] sm:$0xff]
    %v261 = vld [vmem:[#allocation2 + $0x30] sm:$0xff]
    %v262 = vld [vmem:[#allocation2 + $0x38] sm:$0xff]
    %v263 = vld [vmem:[#allocation2 + $0x40] sm:$0xff]
    %v264 = vld [vmem:[%s1] sm:$0xff]
    %v265 = vld [vmem:[%s1 + $0x8] sm:$0xff]
    %v266 = vld [vmem:[%s1 + $0x10] sm:$0xff]
    %v267 = vld [vmem:[%s1 + $0x18] sm:$0xff]
    %v268 = vld [vmem:[%s1 + $0x20] sm:$0xff]
    %v269 = vld [vmem:[%s1 + $0x28] sm:$0xff]
    %v270 = vld [vmem:[%s1 + $0x30] sm:$0xff]
    %v271 = vld [vmem:[%s1 + $0x38] sm:$0xff]
    %v272 = vld [vmem:[%s1 + $0x40] sm:$0xff]
    %v273 = vld [vmem:[%s1 + $0x48] sm:$0xff]
    %v274 = vld [vmem:[%s1 + $0x50] sm:$0xff]
    %v275 = vld [vmem:[%s1 + $0x58] sm:$0xff]
    %v276 = vld [vmem:[%s1 + $0x60] sm:$0xff]
    %v277 = vld [vmem:[%s1 + $0x68] sm:$0xff]
    %v278 = vld [vmem:[%s1 + $0x70] sm:$0xff]
    %v279 = vld [vmem:[%s1 + $0x78] sm:$0xff]
    %v280 = vld [vmem:[%s2] sm:$0x3]
    %v282 = vlaneseq
    %v283 = vshrl.u32 %v282, 7
    %v284 = vsub.s32 0, %v283
    %v285 = vrot.slane %v280, %v284
    %v286 = vlaneseq
    %v287 = vshrl.u32 %v286, 7
    %v288 = vsub.s32 1, %v287
    %v289 = vrot.slane %v280, %v288
    %v308 = vunpack.c.l.b16 %v264
    %v309 = vunpack.c.h.b16 %v264
    %v310 = vunpack.c.l.b16 %v265
    %v311 = vunpack.c.h.b16 %v265
    %v312 = vunpack.c.l.b16 %v266
    %v313 = vunpack.c.h.b16 %v266
    %v314 = vunpack.c.l.b16 %v267
    %v315 = vunpack.c.h.b16 %v267
    %v316 = vunpack.c.l.b16 %v268
    %v317 = vunpack.c.h.b16 %v268
    %v318 = vunpack.c.l.b16 %v269
    %v319 = vunpack.c.h.b16 %v269
    %v320 = vunpack.c.l.b16 %v270
    %v321 = vunpack.c.h.b16 %v270
    %v322 = vunpack.c.l.b16 %v271
    %v323 = vunpack.c.h.b16 %v271
    %v324 = vunpack.c.l.b16 %v272
    %v325 = vunpack.c.h.b16 %v272
    %v326 = vunpack.c.l.b16 %v273
    %v327 = vunpack.c.h.b16 %v273
    %v328 = vunpack.c.l.b16 %v274
    %v329 = vunpack.c.h.b16 %v274
    %v330 = vunpack.c.l.b16 %v275
    %v331 = vunpack.c.h.b16 %v275
    %v332 = vunpack.c.l.b16 %v276
    %v333 = vunpack.c.h.b16 %v276
    %v334 = vunpack.c.l.b16 %v277
    %v335 = vunpack.c.h.b16 %v277
    %v336 = vunpack.c.l.b16 %v278
    %v337 = vunpack.c.h.b16 %v278
    %v338 = vunpack.c.l.b16 %v279
    %v339 = vunpack.c.h.b16 %v279
    %v340 = vpack.c.b16 %v310, %v308
    %v341 = vpack.c.b16 %v311, %v309
    %v342 = vpack.c.b16 %v314, %v312
    %v343 = vpack.c.b16 %v315, %v313
    %v344 = vpack.c.b16 %v318, %v316
    %v345 = vpack.c.b16 %v319, %v317
    %v346 = vpack.c.b16 %v322, %v320
    %v347 = vpack.c.b16 %v323, %v321
    %v348 = vpack.c.b16 %v326, %v324
    %v349 = vpack.c.b16 %v327, %v325
    %v350 = vpack.c.b16 %v330, %v328
    %v351 = vpack.c.b16 %v331, %v329
    %v352 = vpack.c.b16 %v334, %v332
    %v353 = vpack.c.b16 %v335, %v333
    %v354 = vpack.c.b16 %v338, %v336
    %v355 = vpack.c.b16 %v339, %v337
    %372 = vmatprep.subr.bf16.mxu0 %v341
    %373 = vmatpush1.bf16.msra.mxu0 %v340
    %374 = vmatprep.subr.bf16.mxu0 %v343
    %375 = vmatpush1.bf16.msra.mxu0 %v342
    %376 = vmatprep.subr.bf16.mxu0 %v345
    %377 = vmatpush1.bf16.msra.mxu0 %v344
    %378 = vmatprep.subr.bf16.mxu0 %v347
    %379 = vmatpush1.bf16.msra.mxu0 %v346
    %380 = vmatprep.subr.bf16.mxu0 %v349
    %381 = vmatpush1.bf16.msra.mxu0 %v348
    %382 = vmatprep.subr.bf16.mxu0 %v351
    %383 = vmatpush1.bf16.msra.mxu0 %v350
    %384 = vmatprep.subr.bf16.mxu0 %v353
    %385 = vmatpush1.bf16.msra.mxu0 %v352
    %386 = vmatprep.subr.bf16.mxu0 %v355
    %387 = vmatpush1.bf16.msra.mxu0 %v354
    %388 = vmatprep.subr.bf16.mxu0 0
    %389 = vmatpush1.bf16.msra.mxu0 0
    %390 = vmatprep.subr.bf16.mxu0 0
    %391 = vmatpush1.bf16.msra.mxu0 0
    %392 = vmatprep.subr.bf16.mxu0 0
    %393 = vmatpush1.bf16.msra.mxu0 0
    %394 = vmatprep.subr.bf16.mxu0 0
    %395 = vmatpush1.bf16.msra.mxu0 0
    %396 = vmatprep.subr.bf16.mxu0 0
    %397 = vmatpush1.bf16.msra.mxu0 0
    %398 = vmatprep.subr.bf16.mxu0 0
    %399 = vmatpush1.bf16.msra.mxu0 0
    %400 = vmatprep.subr.bf16.mxu0 0
    %401 = vmatpush1.bf16.msra.mxu0 0
    %402 = vmatprep.subr.bf16.mxu0 0
    %403 = vmatpush1.bf16.msra.mxu0 0
    %404 = vmatprep.mubr.bf16.mxu0 0
    %405 = vmatmul.mubr.bf16.gmra.mrb[0].mxu0 %v255
    %v406 = vpop.f32.mrb[0].mxu0
    %v407 = vadd.f32 %v285, %v406
    %v408 = vpop.f32.mrb[0].mxu0
    %v409 = vadd.f32 %v289, %v408
    %v410 = vpop.f32.mrb[0].mxu0
    %v411 = vadd.f32 %v285, %v410
    %v412 = vpop.f32.mrb[0].mxu0
    %v413 = vadd.f32 %v289, %v412
    %414 = vmatprep.mubr.bf16.mxu0 0
    %415 = vmatmul.mubr.bf16.gmra.mrb[0].mxu0 %v256
    %v416 = vpop.f32.mrb[0].mxu0
    %v417 = vadd.f32 %v285, %v416
    %v418 = vpop.f32.mrb[0].mxu0
    %v419 = vadd.f32 %v289, %v418
    %v420 = vpop.f32.mrb[0].mxu0
    %v421 = vadd.f32 %v285, %v420
    %v422 = vpop.f32.mrb[0].mxu0
    %v423 = vadd.f32 %v289, %v422
    %424 = vmatprep.mubr.bf16.mxu0 0
    %425 = vmatmul.mubr.bf16.gmra.mrb[0].mxu0 %v257
    %v426 = vpop.f32.mrb[0].mxu0
    %v427 = vadd.f32 %v285, %v426
    %v428 = vpop.f32.mrb[0].mxu0
    %v429 = vadd.f32 %v289, %v428
    %v430 = vpop.f32.mrb[0].mxu0
    %v431 = vadd.f32 %v285, %v430
    %v432 = vpop.f32.mrb[0].mxu0
    %v433 = vadd.f32 %v289, %v432
    %434 = vmatprep.mubr.bf16.mxu0 0
    %435 = vmatmul.mubr.bf16.gmra.mrb[0].mxu0 %v258
    %v436 = vpop.f32.mrb[0].mxu0
    %v437 = vadd.f32 %v285, %v436
    %v438 = vpop.f32.mrb[0].mxu0
    %v439 = vadd.f32 %v289, %v438
    %v440 = vpop.f32.mrb[0].mxu0
    %v441 = vadd.f32 %v285, %v440
    %v442 = vpop.f32.mrb[0].mxu0
    %v443 = vadd.f32 %v289, %v442
    %444 = vmatprep.mubr.bf16.mxu0 0
    %445 = vmatmul.mubr.bf16.gmra.mrb[0].mxu0 %v259
    %v446 = vpop.f32.mrb[0].mxu0
    %v447 = vadd.f32 %v285, %v446
    %v448 = vpop.f32.mrb[0].mxu0
    %v449 = vadd.f32 %v289, %v448
    %v450 = vpop.f32.mrb[0].mxu0
    %v451 = vadd.f32 %v285, %v450
    %v452 = vpop.f32.mrb[0].mxu0
    %v453 = vadd.f32 %v289, %v452
    %454 = vmatprep.mubr.bf16.mxu0 0
    %455 = vmatmul.mubr.bf16.gmra.mrb[0].mxu0 %v260
    %v456 = vpop.f32.mrb[0].mxu0
    %v457 = vadd.f32 %v285, %v456
    %v458 = vpop.f32.mrb[0].mxu0
    %v459 = vadd.f32 %v289, %v458
    %v460 = vpop.f32.mrb[0].mxu0
    %v461 = vadd.f32 %v285, %v460
    %v462 = vpop.f32.mrb[0].mxu0
    %v463 = vadd.f32 %v289, %v462
    %464 = vmatprep.mubr.bf16.mxu0 0
    %465 = vmatmul.mubr.bf16.gmra.mrb[0].mxu0 %v261
    %v466 = vpop.f32.mrb[0].mxu0
    %v467 = vadd.f32 %v285, %v466
    %v468 = vpop.f32.mrb[0].mxu0
    %v469 = vadd.f32 %v289, %v468
    %v470 = vpop.f32.mrb[0].mxu0
    %v471 = vadd.f32 %v285, %v470
    %v472 = vpop.f32.mrb[0].mxu0
    %v473 = vadd.f32 %v289, %v472
    %474 = vmatprep.mubr.bf16.mxu0 0
    %475 = vmatmul.mubr.bf16.gmra.mrb[0].mxu0 %v262
    %v476 = vpop.f32.mrb[0].mxu0
    %v477 = vadd.f32 %v285, %v476
    %v478 = vpop.f32.mrb[0].mxu0
    %v479 = vadd.f32 %v289, %v478
    %v480 = vpop.f32.mrb[0].mxu0
    %v481 = vadd.f32 %v285, %v480
    %v482 = vpop.f32.mrb[0].mxu0
    %v483 = vadd.f32 %v289, %v482
    %484 = vmatprep.mubr.bf16.mxu0 0
    %485 = vmatmul.mubr.bf16.gmra.mrb[0].mxu0 %v263
    %v486 = vpop.f32.mrb[0].mxu0
    %v487 = vadd.f32 %v285, %v486
    %v488 = vpop.f32.mrb[0].mxu0
    %v489 = vadd.f32 %v289, %v488
    %v490 = vpop.f32.mrb[0].mxu0
    %v491 = vadd.f32 %v285, %v490
    %v492 = vpop.f32.mrb[0].mxu0
    %v493 = vadd.f32 %v289, %v492
    %494 = vdwg.mxu0
    %495 = vst [vmem:[#allocation3] sm:$0xff] %v407
    %vm496 = vcmask 523264
    %497 = vst.msk [vmem:[#allocation3 + $0x8] sm:$0xff] %vm496, %v409
    %498 = vst [vmem:[#allocation3 + $0x10] sm:$0xff] %v411
    %499 = vst.msk [vmem:[#allocation3 + $0x18] sm:$0xff] %vm496, %v413
    %500 = vst [vmem:[#allocation3 + $0x20] sm:$0xff] %v417
    %501 = vst.msk [vmem:[#allocation3 + $0x28] sm:$0xff] %vm496, %v419
    %502 = vst [vmem:[#allocation3 + $0x30] sm:$0xff] %v421
    %503 = vst.msk [vmem:[#allocation3 + $0x38] sm:$0xff] %vm496, %v423
    %504 = vst [vmem:[#allocation3 + $0x40] sm:$0xff] %v427
    %505 = vst.msk [vmem:[#allocation3 + $0x48] sm:$0xff] %vm496, %v429
    %506 = vst [vmem:[#allocation3 + $0x50] sm:$0xff] %v431
    %507 = vst.msk [vmem:[#allocation3 + $0x58] sm:$0xff] %vm496, %v433
    %508 = vst [vmem:[#allocation3 + $0x60] sm:$0xff] %v437
    %509 = vst.msk [vmem:[#allocation3 + $0x68] sm:$0xff] %vm496, %v439
    %510 = vst [vmem:[#allocation3 + $0x70] sm:$0xff] %v441
    %511 = vst.msk [vmem:[#allocation3 + $0x78] sm:$0xff] %vm496, %v443
    %512 = vst [vmem:[#allocation3 + $0x80] sm:$0xff] %v447
    %513 = vst.msk [vmem:[#allocation3 + $0x88] sm:$0xff] %vm496, %v449
    %514 = vst [vmem:[#allocation3 + $0x90] sm:$0xff] %v451
    %515 = vst.msk [vmem:[#allocation3 + $0x98] sm:$0xff] %vm496, %v453
    %516 = vst [vmem:[#allocation3 + $0xa0] sm:$0xff] %v457
    %517 = vst.msk [vmem:[#allocation3 + $0xa8] sm:$0xff] %vm496, %v459
    %518 = vst [vmem:[#allocation3 + $0xb0] sm:$0xff] %v461
    %519 = vst.msk [vmem:[#allocation3 + $0xb8] sm:$0xff] %vm496, %v463
    %520 = vst [vmem:[#allocation3 + $0xc0] sm:$0xff] %v467
    %521 = vst.msk [vmem:[#allocation3 + $0xc8] sm:$0xff] %vm496, %v469
    %522 = vst [vmem:[#allocation3 + $0xd0] sm:$0xff] %v471
    %523 = vst.msk [vmem:[#allocation3 + $0xd8] sm:$0xff] %vm496, %v473
    %524 = vst [vmem:[#allocation3 + $0xe0] sm:$0xff] %v477
    %525 = vst.msk [vmem:[#allocation3 + $0xe8] sm:$0xff] %vm496, %v479
    %526 = vst [vmem:[#allocation3 + $0xf0] sm:$0xff] %v481
    %527 = vst.msk [vmem:[#allocation3 + $0xf8] sm:$0xff] %vm496, %v483
    %528 = vst [vmem:[#allocation3 + $0x100] sm:$0xff] %v487
    %529 = vst.msk [vmem:[#allocation3 + $0x108] sm:$0xff] %vm496, %v489
    %530 = vst [vmem:[#allocation3 + $0x110] sm:$0xff] %v491
    %531 = vst.msk [vmem:[#allocation3 + $0x118] sm:$0xff] %vm496, %v493
    // Predicated region
    $region18: #{prenorm_linear.1} parent=1 // pred_check
      _
    $region19: #{prenorm_linear.1} parent=1 // pred_check_branch
      %533 = sbr.rel (0) target = $region21
    $region20: #{prenorm_linear.1} parent=1 // pred_region
      %s535 = ssub.s32 4608, 4608
      %536 = vsyncadd [#allocation4], %s535
      %s537 = sshll.u32 [#allocation3], 4
      %s538 = int_to_ptr.vmem [resolvable:$true] %s537
      %543 = dma.vmem_to_hbm [thread:$0]  %s538, 4608, %s3, [#allocation4], 256, 256, 16
    $region21: #{prenorm_linear.1} parent=1 // pred_fallthru
      _
    // Predicated region
    $region22: #{prenorm_linear.1} parent=1 // pred_check
      _
    $region23: #{prenorm_linear.1} parent=1 // pred_check_branch
      %545 = sbr.rel (0) target = $region25
    $region24: #{prenorm_linear.1} parent=1 // pred_region
      %546 = dma.done [#allocation4], 4608
    $region25: #{prenorm_linear.1} parent=1 // pred_fallthru
      _
    %547 = vsyncpa [#allocation4], 1

</llo_original>
